<compile_context>
chip_gen: v6e
topology: v6e:2x2x1
jax: 0.10.0
libtpu: 0.0.40
codegen_flags: <defaults>
</compile_context>

<pallas_src>
import functools

import jax
import jax.numpy as jnp
from jax.experimental import pallas as pl
from jax.experimental.pallas import tpu as pltpu


def _ceil8(n):
    return ((n + 7) // 8) * 8


def decoder_unit_kernel(
    ids_ref,   # (B,)            i32, SMEM  - yPrev token ids
    x_ref,     # (B, T, X)       f32, VMEM
    s_ref,     # (B, S)          f32, VMEM  - previous hidden state (squeezed)
    att_ref,   # (ATT_ROWS, A)   f32, VMEM  - packed attention weights + embedding
    gru_ref,   # (GRU_ROWS, 3S)  f32, VMEM  - packed fused GRU weights/biases
    fc_ref,    # (S + 1, Y)      f32, VMEM  - packed fc weight/bias
    out_ref,   # (B, Y + S)      f32, VMEM  - [logits | new hidden]
    *,
    B, T, X, S, A, Y,
    off_sw, off_bias, off_emb, off_whh, off_gb,
):
    f32 = jnp.float32
    x = x_ref[...]                                        # (B, T, X)
    s = s_ref[...]                                        # (B, S)

    # ---- unpack attention weights (static slices of one packed block) ----
    xE_wT = att_ref[pl.ds(0, X), :]                       # (X, A)
    sE_wT = att_ref[pl.ds(off_sw, S), :]                  # (S, A)
    xE_b = att_ref[pl.ds(off_bias, 1), :]                 # (1, A)
    sE_b = att_ref[pl.ds(off_bias + 1, 1), :]             # (1, A)
    wE_w = att_ref[pl.ds(off_bias + 2, 1), :]             # (1, A)
    wE_b = att_ref[pl.ds(off_bias + 3, 1), :][:, 0:1]     # (1, 1)

    # ---- AttentionUnit ----
    x2d = x.reshape(B * T, X)
    xproj = jnp.dot(x2d, xE_wT, preferred_element_type=f32) + xE_b   # (B*T, A)
    xproj = xproj.reshape(B, T, A)
    sproj = jnp.dot(s, sE_wT, preferred_element_type=f32) + sE_b     # (B, A)
    sum_tanh = jnp.tanh(sproj[:, None, :] + xproj)                   # (B, T, A)
    # vProj: VPU multiply + lane (XLU) reduce — intentionally not a matmul.
    v = jnp.sum(sum_tanh * wE_w[None, :, :], axis=2) + wE_b          # (B, T)
    # stable softmax over T (exact division for reference parity)
    v = v - jnp.max(v, axis=1, keepdims=True)
    ev = jnp.exp(v)
    alpha = ev / jnp.sum(ev, axis=1, keepdims=True)                  # (B, T)

    # ---- context = bmm(alpha.unsqueeze(1), x).squeeze(1) ----
    context = jnp.sum(alpha[:, :, None] * x, axis=1)                 # (B, X)

    # ---- tgt_embedding(yPrev): SMEM-id driven row gather (no one-hot) ----
    # Note: out-of-range ids read neighbouring packed rows (no bounds check),
    # unlike PyTorch which would raise.
    rows = []
    for b in range(B):
        idx = ids_ref[b]
        rows.append(att_ref[pl.ds(off_emb + idx, 1), :])             # (1, A)
    yproj = jnp.concatenate(rows, axis=0)                            # (B, A)

    # ---- fused GRU cell (single step, PyTorch gate order r, z, n) ----
    gin = jnp.concatenate([yproj, context], axis=1)                  # (B, A+X)
    w_ih = gru_ref[pl.ds(0, A + X), :]                               # (A+X, 3S)
    w_hh = gru_ref[pl.ds(off_whh, S), :]                             # (S, 3S)
    b_ih = gru_ref[pl.ds(off_gb, 1), :]                              # (1, 3S)
    b_hh = gru_ref[pl.ds(off_gb + 1, 1), :]                          # (1, 3S)
    gi = jnp.dot(gin, w_ih, preferred_element_type=f32) + b_ih       # (B, 3S)
    gh = jnp.dot(s, w_hh, preferred_element_type=f32) + b_hh         # (B, 3S)
    r = jax.nn.sigmoid(gi[:, 0:S] + gh[:, 0:S])
    z = jax.nn.sigmoid(gi[:, S:2 * S] + gh[:, S:2 * S])
    n = jnp.tanh(gi[:, 2 * S:3 * S] + r * gh[:, 2 * S:3 * S])
    h = (1.0 - z) * n + z * s                                        # (B, S)

    # ---- fc ----
    fc_w = fc_ref[pl.ds(0, S), :]                                    # (S, Y)
    fc_b = fc_ref[pl.ds(S, 1), :]                                    # (1, Y)
    logits = jnp.dot(h, fc_w, preferred_element_type=f32) + fc_b     # (B, Y)

    # single lane-dense output store: [logits | new hidden state]
    out_ref[...] = jnp.concatenate([logits, h], axis=1).astype(out_ref.dtype)


class DecoderUnitPallas:
    """Deterministically initialized JAX/Pallas equivalent of DecoderUnit."""

    def __init__(self, sDim, xDim, yDim, attDim, key):
        self.sDim, self.xDim, self.yDim, self.attDim = sDim, xDim, yDim, attDim
        emdDim = attDim
        V = yDim + 1
        self.V = V
        ks = jax.random.split(key, 10)
        std = 0.01

        def nrm(k, shape):
            return (std * jax.random.normal(k, shape)).astype(jnp.float32)

        # --- raw parameters (also used by the pure-JAX reference) ---
        self.xE_wT = nrm(ks[0], (xDim, attDim))
        self.xE_b = jnp.zeros((1, attDim), jnp.float32)
        self.sE_wT = nrm(ks[1], (sDim, attDim))
        self.sE_b = jnp.zeros((1, attDim), jnp.float32)
        self.wE_w = nrm(ks[2], (1, attDim))
        self.wE_b = jnp.zeros((1, 1), jnp.float32)
        self.emb = nrm(ks[3], (V, emdDim))

        # GRU (input = [yProj(emdDim), context(xDim)]), torch gate order r,z,n
        w_ih = nrm(ks[4], (3 * sDim, emdDim + xDim))   # torch (3S, in) layout
        w_hh = nrm(ks[5], (3 * sDim, sDim))
        b_ih = nrm(ks[6], (3 * sDim,))
        b_hh = nrm(ks[7], (3 * sDim,))
        self.w_ih_T = w_ih.T                            # (emd+X, 3S)
        self.w_hh_T = w_hh.T                            # (S, 3S)
        self.b_ih = b_ih.reshape(1, 3 * sDim)
        self.b_hh = b_hh.reshape(1, 3 * sDim)

        self.fc_wT = nrm(ks[8], (sDim, yDim))
        self.fc_b = jnp.zeros((1, yDim), jnp.float32)

        # --- packed kernel operands (built once, reused every call) ---
        # attention + embedding pack (last dim = attDim), 8-row aligned sections
        self.off_sw = _ceil8(xDim)
        self.off_bias = self.off_sw + _ceil8(sDim)
        self.off_emb = self.off_bias + 8
        att = jnp.zeros((self.off_emb + V, attDim), jnp.float32)
        att = att.at[0:xDim].set(self.xE_wT)
        att = att.at[self.off_sw:self.off_sw + sDim].set(self.sE_wT)
        att = att.at[self.off_bias].set(self.xE_b[0])
        att = att.at[self.off_bias + 1].set(self.sE_b[0])
        att = att.at[self.off_bias + 2].set(self.wE_w[0])
        att = att.at[self.off_bias + 3].set(jnp.full((attDim,), self.wE_b[0, 0]))
        att = att.at[self.off_emb:self.off_emb + V].set(self.emb)
        self.att_pack = att

        # fused GRU pack (last dim = 3 * sDim)
        in_dim = emdDim + xDim
        self.off_whh = _ceil8(in_dim)
        self.off_gb = self.off_whh + _ceil8(sDim)
        gru = jnp.zeros((self.off_gb + 2, 3 * sDim), jnp.float32)
        gru = gru.at[0:in_dim].set(self.w_ih_T)
        gru = gru.at[self.off_whh:self.off_whh + sDim].set(self.w_hh_T)
        gru = gru.at[self.off_gb].set(self.b_ih[0])
        gru = gru.at[self.off_gb + 1].set(self.b_hh[0])
        self.gru_pack = gru

        # fc pack (last dim = yDim)
        fc = jnp.zeros((sDim + 1, yDim), jnp.float32)
        fc = fc.at[0:sDim].set(self.fc_wT)
        fc = fc.at[sDim].set(self.fc_b[0])
        self.fc_pack = fc

    @functools.partial(jax.jit, static_argnums=0)
    def __call__(self, x, sPrev, yPrev):
        # x: (B, T, xDim) f32, sPrev: (1, B, sDim) f32, yPrev: (B,) int
        B, T, _ = x.shape
        s = sPrev[0]                                      # (B, S)
        y_ids = yPrev.astype(jnp.int32).reshape((B,))     # (B,) -> SMEM

        kernel = functools.partial(
            decoder_unit_kernel,
            B=B, T=T, X=self.xDim, S=self.sDim, A=self.attDim, Y=self.yDim,
            off_sw=self.off_sw, off_bias=self.off_bias, off_emb=self.off_emb,
            off_whh=self.off_whh, off_gb=self.off_gb,
        )
        # NOTE: if this unit is driven inside an autoregressive decode loop,
        # the next step is to hoist that loop into a grid axis (constant-index
        # weight BlockSpecs + input_output_aliases on the hidden state) so the
        # packed weights stay VMEM-resident across steps instead of being
        # re-DMA'd on every pallas_call.
        combined = pl.pallas_call(
            kernel,
            out_shape=jax.ShapeDtypeStruct((B, self.yDim + self.sDim),
                                           jnp.float32),
            in_specs=[
                pl.BlockSpec(memory_space=pltpu.MemorySpace.SMEM),   # y ids
                pl.BlockSpec(memory_space=pltpu.MemorySpace.VMEM),   # x
                pl.BlockSpec(memory_space=pltpu.MemorySpace.VMEM),   # sPrev
                pl.BlockSpec(memory_space=pltpu.MemorySpace.VMEM),   # att pack
                pl.BlockSpec(memory_space=pltpu.MemorySpace.VMEM),   # gru pack
                pl.BlockSpec(memory_space=pltpu.MemorySpace.VMEM),   # fc pack
            ],
            out_specs=pl.BlockSpec(memory_space=pltpu.MemorySpace.VMEM),
        )(y_ids, x, s, self.att_pack, self.gru_pack, self.fc_pack)

        out = combined[:, :self.yDim]                     # (B, Y)
        h = combined[:, self.yDim:]                       # (B, S)
        return out, h[None, :, :]                         # state like torch GRU

    # Pure-JAX reference for correctness checking.
    def reference(self, x, sPrev, yPrev):
        s = sPrev[0]
        xproj = x @ self.xE_wT + self.xE_b                # (B, T, A)
        sproj = s @ self.sE_wT + self.sE_b                # (B, A)
        st = jnp.tanh(sproj[:, None, :] + xproj)
        v = jnp.sum(st * self.wE_w.reshape(1, 1, -1), axis=2) + self.wE_b[0, 0]
        alpha = jax.nn.softmax(v, axis=1)
        context = jnp.einsum('bt,btx->bx', alpha, x)
        yproj = self.emb[yPrev.astype(jnp.int32)]
        gin = jnp.concatenate([yproj, context], axis=1)
        gi = gin @ self.w_ih_T + self.b_ih
        gh = s @ self.w_hh_T + self.b_hh
        S = self.sDim
        r = jax.nn.sigmoid(gi[:, :S] + gh[:, :S])
        z = jax.nn.sigmoid(gi[:, S:2 * S] + gh[:, S:2 * S])
        n = jnp.tanh(gi[:, 2 * S:] + r * gh[:, 2 * S:])
        h = (1.0 - z) * n + z * s
        out = h @ self.fc_wT + self.fc_b
        return out, h[None]


if __name__ == "__main__":
    key = jax.random.PRNGKey(0)
    k_param, k_x, k_s, k_y = jax.random.split(key, 4)

    B, T = 2, 8
    sDim, xDim, yDim, attDim = 32, 32, 16, 32

    model = DecoderUnitPallas(sDim, xDim, yDim, attDim, k_param)

    x = jax.random.normal(k_x, (B, T, xDim), dtype=jnp.float32)
    sPrev = jax.random.normal(k_s, (1, B, sDim), dtype=jnp.float32)
    yPrev = jax.random.randint(k_y, (B,), 0, yDim + 1, dtype=jnp.int32)

    out, state = model(x, sPrev, yPrev)
    out = jax.block_until_ready(out)
    state = jax.block_until_ready(state)

    ref_out, ref_state = model.reference(x, sPrev, yPrev)
    assert out.shape == (B, yDim) and state.shape == (1, B, sDim)
    assert jnp.allclose(out, ref_out, atol=1e-5, rtol=1e-5)
    assert jnp.allclose(state, ref_state, atol=1e-5, rtol=1e-5)

    print("KERNEL_OK")
</pallas_src>

<mosaic_0001>
module attributes {stable_mosaic.version = 11 : i64} {
  func.func @decoder_unit_kernel(%arg0: memref<2xi32, #tpu.memory_space<smem>>, %arg1: memref<2x8x32xf32, #tpu.memory_space<vmem>>, %arg2: memref<2x32xf32, #tpu.memory_space<vmem>>, %arg3: memref<89x32xf32, #tpu.memory_space<vmem>>, %arg4: memref<98x96xf32, #tpu.memory_space<vmem>>, %arg5: memref<33x16xf32, #tpu.memory_space<vmem>>, %arg6: memref<2x48xf32, #tpu.memory_space<vmem>>) attributes {dimension_semantics = [], scalar_prefetch = 0 : i64, scratch_operands = 0 : i64, tpu.core_type = #tpu.core_type<tc>} {
    %c0 = arith.constant 0 : index
    %c0_0 = arith.constant 0 : index
    %c0_1 = arith.constant 0 : index
    %0 = vector.load %arg1[%c0, %c0_0, %c0_1] : memref<2x8x32xf32, #tpu.memory_space<vmem>>, vector<2x8x32xf32>
    %c0_2 = arith.constant 0 : index
    %c0_3 = arith.constant 0 : index
    %1 = vector.load %arg2[%c0_2, %c0_3] : memref<2x32xf32, #tpu.memory_space<vmem>>, vector<2x32xf32>
    %c0_4 = arith.constant 0 : index
    %c0_5 = arith.constant 0 : index
    %2 = vector.load %arg3[%c0_4, %c0_5] : memref<89x32xf32, #tpu.memory_space<vmem>>, vector<32x32xf32>
    %c32 = arith.constant 32 : index
    %c0_6 = arith.constant 0 : index
    %3 = vector.load %arg3[%c32, %c0_6] : memref<89x32xf32, #tpu.memory_space<vmem>>, vector<32x32xf32>
    %c64 = arith.constant 64 : index
    %c0_7 = arith.constant 0 : index
    %4 = vector.load %arg3[%c64, %c0_7] : memref<89x32xf32, #tpu.memory_space<vmem>>, vector<1x32xf32>
    %c65 = arith.constant 65 : index
    %c0_8 = arith.constant 0 : index
    %5 = vector.load %arg3[%c65, %c0_8] : memref<89x32xf32, #tpu.memory_space<vmem>>, vector<1x32xf32>
    %c66 = arith.constant 66 : index
    %c0_9 = arith.constant 0 : index
    %6 = vector.load %arg3[%c66, %c0_9] : memref<89x32xf32, #tpu.memory_space<vmem>>, vector<1x32xf32>
    %c67 = arith.constant 67 : index
    %c0_10 = arith.constant 0 : index
    %7 = vector.load %arg3[%c67, %c0_10] : memref<89x32xf32, #tpu.memory_space<vmem>>, vector<1x32xf32>
    %8 = vector.extract_strided_slice %7 {offsets = [0, 0], sizes = [1, 1], strides = [1, 1]} : vector<1x32xf32> to vector<1x1xf32>
    %9 = vector.shape_cast %0 : vector<2x8x32xf32> to vector<16x32xf32>
    %cst = arith.constant dense<0.000000e+00> : vector<16x32xf32>
    %10 = tpu.matmul %9, %2, %cst {dimension_numbers = #tpu.dot_dimension_numbers<[1], [0], [0], [1], [0, 0, 1, 1], [], []>} : vector<16x32xf32>, vector<32x32xf32>, vector<16x32xf32> -> vector<16x32xf32>
    %11 = vector.broadcast %4 : vector<1x32xf32> to vector<16x32xf32>
    %12 = arith.addf %10, %11 : vector<16x32xf32>
    %13 = vector.shape_cast %12 : vector<16x32xf32> to vector<2x8x32xf32>
    %cst_11 = arith.constant dense<0.000000e+00> : vector<2x32xf32>
    %14 = tpu.matmul %1, %3, %cst_11 {dimension_numbers = #tpu.dot_dimension_numbers<[1], [0], [0], [1], [0, 0, 1, 1], [], []>} : vector<2x32xf32>, vector<32x32xf32>, vector<2x32xf32> -> vector<2x32xf32>
    %15 = vector.broadcast %5 : vector<1x32xf32> to vector<2x32xf32>
    %16 = arith.addf %14, %15 : vector<2x32xf32>
    %17 = vector.shape_cast %16 : vector<2x32xf32> to vector<2x1x32xf32>
    %18 = vector.broadcast %17 : vector<2x1x32xf32> to vector<2x8x32xf32>
    %19 = arith.addf %18, %13 : vector<2x8x32xf32>
    %20 = math.tanh %19 : vector<2x8x32xf32>
    %21 = vector.shape_cast %6 : vector<1x32xf32> to vector<1x1x32xf32>
    %22 = vector.broadcast %21 : vector<1x1x32xf32> to vector<2x8x32xf32>
    %23 = arith.mulf %20, %22 : vector<2x8x32xf32>
    %cst_12 = arith.constant dense<0.000000e+00> : vector<2x8xf32>
    %24 = vector.multi_reduction <add>, %23, %cst_12 [2] : vector<2x8x32xf32> to vector<2x8xf32>
    %25 = vector.broadcast %8 : vector<1x1xf32> to vector<2x8xf32>
    %26 = arith.addf %24, %25 : vector<2x8xf32>
    %cst_13 = arith.constant dense<0xFF800000> : vector<2xf32>
    %27 = vector.multi_reduction <maximumf>, %26, %cst_13 [1] : vector<2x8xf32> to vector<2xf32>
    %28 = vector.shape_cast %27 : vector<2xf32> to vector<2x1xf32>
    %29 = vector.broadcast %28 : vector<2x1xf32> to vector<2x8xf32>
    %30 = arith.subf %26, %29 : vector<2x8xf32>
    %31 = math.exp %30 : vector<2x8xf32>
    %cst_14 = arith.constant dense<0.000000e+00> : vector<2xf32>
    %32 = vector.multi_reduction <add>, %31, %cst_14 [1] : vector<2x8xf32> to vector<2xf32>
    %33 = vector.shape_cast %32 : vector<2xf32> to vector<2x1xf32>
    %34 = vector.broadcast %33 : vector<2x1xf32> to vector<2x8xf32>
    %35 = arith.divf %31, %34 : vector<2x8xf32>
    %36 = vector.shape_cast %35 : vector<2x8xf32> to vector<2x8x1xf32>
    %37 = vector.broadcast %36 : vector<2x8x1xf32> to vector<2x8x32xf32>
    %38 = arith.mulf %37, %0 : vector<2x8x32xf32>
    %cst_15 = arith.constant dense<0.000000e+00> : vector<2x32xf32>
    %39 = vector.multi_reduction <add>, %38, %cst_15 [1] : vector<2x8x32xf32> to vector<2x32xf32>
    %c0_16 = arith.constant 0 : index
    %40 = memref.load %arg0[%c0_16] : memref<2xi32, #tpu.memory_space<smem>>
    %c72_i32 = arith.constant 72 : i32
    %41 = arith.addi %c72_i32, %40 : i32
    %42 = arith.index_cast %41 : i32 to index
    %c0_17 = arith.constant 0 : index
    %43 = vector.load %arg3[%42, %c0_17] : memref<89x32xf32, #tpu.memory_space<vmem>>, vector<1x32xf32>
    %c1 = arith.constant 1 : index
    %44 = memref.load %arg0[%c1] : memref<2xi32, #tpu.memory_space<smem>>
    %c72_i32_18 = arith.constant 72 : i32
    %45 = arith.addi %c72_i32_18, %44 : i32
    %46 = arith.index_cast %45 : i32 to index
    %c0_19 = arith.constant 0 : index
    %47 = vector.load %arg3[%46, %c0_19] : memref<89x32xf32, #tpu.memory_space<vmem>>, vector<1x32xf32>
    %48 = tpu.concatenate %43, %47 in 0 : vector<1x32xf32>, vector<1x32xf32> -> vector<2x32xf32>
    %49 = tpu.concatenate %48, %39 in 1 : vector<2x32xf32>, vector<2x32xf32> -> vector<2x64xf32>
    %c0_20 = arith.constant 0 : index
    %c0_21 = arith.constant 0 : index
    %50 = vector.load %arg4[%c0_20, %c0_21] : memref<98x96xf32, #tpu.memory_space<vmem>>, vector<64x96xf32>
    %c64_22 = arith.constant 64 : index
    %c0_23 = arith.constant 0 : index
    %51 = vector.load %arg4[%c64_22, %c0_23] : memref<98x96xf32, #tpu.memory_space<vmem>>, vector<32x96xf32>
    %c96 = arith.constant 96 : index
    %c0_24 = arith.constant 0 : index
    %52 = vector.load %arg4[%c96, %c0_24] : memref<98x96xf32, #tpu.memory_space<vmem>>, vector<1x96xf32>
    %c97 = arith.constant 97 : index
    %c0_25 = arith.constant 0 : index
    %53 = vector.load %arg4[%c97, %c0_25] : memref<98x96xf32, #tpu.memory_space<vmem>>, vector<1x96xf32>
    %cst_26 = arith.constant dense<0.000000e+00> : vector<2x96xf32>
    %54 = tpu.matmul %49, %50, %cst_26 {dimension_numbers = #tpu.dot_dimension_numbers<[1], [0], [0], [1], [0, 0, 1, 1], [], []>} : vector<2x64xf32>, vector<64x96xf32>, vector<2x96xf32> -> vector<2x96xf32>
    %55 = vector.broadcast %52 : vector<1x96xf32> to vector<2x96xf32>
    %56 = arith.addf %54, %55 : vector<2x96xf32>
    %cst_27 = arith.constant dense<0.000000e+00> : vector<2x96xf32>
    %57 = tpu.matmul %1, %51, %cst_27 {dimension_numbers = #tpu.dot_dimension_numbers<[1], [0], [0], [1], [0, 0, 1, 1], [], []>} : vector<2x32xf32>, vector<32x96xf32>, vector<2x96xf32> -> vector<2x96xf32>
    %58 = vector.broadcast %53 : vector<1x96xf32> to vector<2x96xf32>
    %59 = arith.addf %57, %58 : vector<2x96xf32>
    %60 = vector.extract_strided_slice %56 {offsets = [0, 0], sizes = [2, 32], strides = [1, 1]} : vector<2x96xf32> to vector<2x32xf32>
    %61 = vector.extract_strided_slice %59 {offsets = [0, 0], sizes = [2, 32], strides = [1, 1]} : vector<2x96xf32> to vector<2x32xf32>
    %62 = arith.addf %60, %61 : vector<2x32xf32>
    %63 = arith.negf %62 : vector<2x32xf32>
    %64 = math.exp %63 : vector<2x32xf32>
    %cst_28 = arith.constant 1.000000e+00 : f32
    %65 = vector.broadcast %cst_28 : f32 to vector<2x32xf32>
    %66 = arith.addf %65, %64 : vector<2x32xf32>
    %67 = arith.divf %65, %66 : vector<2x32xf32>
    %68 = vector.extract_strided_slice %56 {offsets = [0, 32], sizes = [2, 32], strides = [1, 1]} : vector<2x96xf32> to vector<2x32xf32>
    %69 = vector.extract_strided_slice %59 {offsets = [0, 32], sizes = [2, 32], strides = [1, 1]} : vector<2x96xf32> to vector<2x32xf32>
    %70 = arith.addf %68, %69 : vector<2x32xf32>
    %71 = arith.negf %70 : vector<2x32xf32>
    %72 = math.exp %71 : vector<2x32xf32>
    %cst_29 = arith.constant 1.000000e+00 : f32
    %73 = vector.broadcast %cst_29 : f32 to vector<2x32xf32>
    %74 = arith.addf %73, %72 : vector<2x32xf32>
    %75 = arith.divf %73, %74 : vector<2x32xf32>
    %76 = vector.extract_strided_slice %56 {offsets = [0, 64], sizes = [2, 32], strides = [1, 1]} : vector<2x96xf32> to vector<2x32xf32>
    %77 = vector.extract_strided_slice %59 {offsets = [0, 64], sizes = [2, 32], strides = [1, 1]} : vector<2x96xf32> to vector<2x32xf32>
    %78 = arith.mulf %67, %77 : vector<2x32xf32>
    %79 = arith.addf %76, %78 : vector<2x32xf32>
    %80 = math.tanh %79 : vector<2x32xf32>
    %cst_30 = arith.constant 1.000000e+00 : f32
    %81 = vector.broadcast %cst_30 : f32 to vector<2x32xf32>
    %82 = arith.subf %81, %75 : vector<2x32xf32>
    %83 = arith.mulf %82, %80 : vector<2x32xf32>
    %84 = arith.mulf %75, %1 : vector<2x32xf32>
    %85 = arith.addf %83, %84 : vector<2x32xf32>
    %c0_31 = arith.constant 0 : index
    %c0_32 = arith.constant 0 : index
    %86 = vector.load %arg5[%c0_31, %c0_32] : memref<33x16xf32, #tpu.memory_space<vmem>>, vector<32x16xf32>
    %c32_33 = arith.constant 32 : index
    %c0_34 = arith.constant 0 : index
    %87 = vector.load %arg5[%c32_33, %c0_34] : memref<33x16xf32, #tpu.memory_space<vmem>>, vector<1x16xf32>
    %cst_35 = arith.constant dense<0.000000e+00> : vector<2x16xf32>
    %88 = tpu.matmul %85, %86, %cst_35 {dimension_numbers = #tpu.dot_dimension_numbers<[1], [0], [0], [1], [0, 0, 1, 1], [], []>} : vector<2x32xf32>, vector<32x16xf32>, vector<2x16xf32> -> vector<2x16xf32>
    %89 = vector.broadcast %87 : vector<1x16xf32> to vector<2x16xf32>
    %90 = arith.addf %88, %89 : vector<2x16xf32>
    %91 = tpu.concatenate %90, %85 in 1 : vector<2x16xf32>, vector<2x32xf32> -> vector<2x48xf32>
    %c0_36 = arith.constant 0 : index
    %c0_37 = arith.constant 0 : index
    %92 = vector.load %arg6[%c0_36, %c0_37] : memref<2x48xf32, #tpu.memory_space<vmem>>, vector<2x48xf32>
    tpu.vector_store %arg6[%c0_36, %c0_37], %91 {strides = array<i32>} : memref<2x48xf32, #tpu.memory_space<vmem>>, vector<2x48xf32>,
    return
  }
}

</mosaic_0001>

<llo_original>
// kernel: a_call__.1
$region0: #{a_call__.1}
  #allocation0 [shape = 'u32[]', space=smem, size = 0x4, offset = 0x4, fixed_abs, tag = 'smem constant byte address 0x4 - core index']
  #allocation1 [shape = 'u32[144,128]{1,0:T(1,128)}', space=vmem, size = 0x12000, scoped, tag = 'internal scratch']
  %s0 = inlined_call_operand.vmem [shape: s32[2], index: 0, kind: input, shape index: {}]
  %s1 = inlined_call_operand.hbm [shape: f32[2,8,32], index: 1, kind: input, shape index: {}]
  %s2 = inlined_call_operand.vmem [shape: f32[2,32], index: 2, kind: input, shape index: {}]
  %s3 = inlined_call_operand.hbm [shape: f32[89,32], index: 3, kind: input, shape index: {}]
  %s4 = inlined_call_operand.hbm [shape: f32[98,96], index: 4, kind: input, shape index: {}]
  %s5 = inlined_call_operand.hbm [shape: f32[33,16], index: 5, kind: input, shape index: {}]
  %s6 = inlined_call_operand.vmem [shape: f32[2,48], index: 6, kind: output, shape index: {}]
  %s7 = sld [smem:[#allocation0]]
  $region54: #{a_call__.1} parent=0
    _
  %s9 = ssub.s32 1, %s7
  %s10 = scalar_select 0, %s9, %s7
  $region1: #{a_call__.1} parent=0
    #allocation2 [shape = 'u8[512]{0}', space=smem, size = 0x200, scoped, tag = 'input window, operand 0, single buffered']
    #allocation3 [shape = 's32[1]{0}', space=sflag, size = 0x4, scoped, tag = 'scoped memory for a_call__.1']
    #allocation4 [shape = 's32[1]{0}', space=sflag, size = 0x4, scoped, tag = 'scoped memory for a_call__.1']
    #allocation5 [shape = 'u8[8192]{0}', space=vmem, size = 0x2000, scoped, tag = 'input window, operand 1, single buffered']
    #allocation6 [shape = 'u8[49152]{0}', space=vmem, size = 0xc000, scoped, tag = 'input window, operand 3, single buffered']
    #allocation7 [shape = 's32[1]{0}', space=sflag, size = 0x4, scoped, tag = 'scoped memory for a_call__.1']
    #allocation8 [shape = 'u8[53248]{0}', space=vmem, size = 0xd000, scoped, tag = 'input window, operand 4, single buffered']
    #allocation9 [shape = 'u8[20480]{0}', space=vmem, size = 0x5000, scoped, tag = 'input window, operand 5, single buffered']
    #allocation10 [shape = 's32[1]{0}', space=sflag, size = 0x4, scoped, tag = 'scoped memory for a_call__.1']
    %11 = vsyncpa [#allocation4], 0
    %12 = vsyncpa [#allocation3], 0
    %13 = vsyncpa [#allocation7], 0
    %14 = vsyncpa [#allocation10], 0
    // Predicated region
    $region2: #{a_call__.1} parent=1 // pred_check
      _
    $region3: #{a_call__.1} parent=1 // pred_check_branch
      %16 = sbr.rel (0) target = $region5
    $region4: #{a_call__.1} parent=1 // pred_region
      %s18 = ssub.s32 16, 16
      %19 = vsyncadd [#allocation4], %s18
      %s21 = sshll.u32 %s0, 4
      %s22 = int_to_ptr.vmem [resolvable:$true] %s21
      %24 = dma.vmem_to_smem %s22, 16, [#allocation2], [#allocation4]
    $region5: #{a_call__.1} parent=1 // pred_fallthru
      _
    // Predicated region
    $region6: #{a_call__.1} parent=1 // pred_check
      _
    $region7: #{a_call__.1} parent=1 // pred_check_branch
      %26 = sbr.rel (0) target = $region9
    $region8: #{a_call__.1} parent=1 // pred_region
      %s28 = ssub.s32 256, 256
      %29 = vsyncadd [#allocation3], %s28
      %s30 = sshll.u32 [#allocation5], 4
      %s31 = int_to_ptr.vmem [resolvable:$true] %s30
      %36 = dma.hbm_to_vmem [thread:$0]  %s1, 256, %s31, [#allocation3], 128, 128, 8
    $region9: #{a_call__.1} parent=1 // pred_fallthru
      _
    // Predicated region
    $region10: #{a_call__.1} parent=1 // pred_check
      _
    $region11: #{a_call__.1} parent=1 // pred_check_branch
      %38 = sbr.rel (0) target = $region13
    $region12: #{a_call__.1} parent=1 // pred_region
      _
    $region13: #{a_call__.1} parent=1 // pred_fallthru
      _
    // Predicated region
    $region14: #{a_call__.1} parent=1 // pred_check
      _
    $region15: #{a_call__.1} parent=1 // pred_check_branch
      %40 = sbr.rel (0) target = $region17
    $region16: #{a_call__.1} parent=1 // pred_region
      %s42 = ssub.s32 1536, 1536
      %43 = vsyncadd [#allocation7], %s42
      %s44 = sshll.u32 [#allocation6], 4
      %s45 = int_to_ptr.vmem [resolvable:$true] %s44
      %50 = dma.hbm_to_vmem [thread:$0]  %s3, 1536, %s45, [#allocation7], 128, 128, 8
    $region17: #{a_call__.1} parent=1 // pred_fallthru
      _
    // Predicated region
    $region18: #{a_call__.1} parent=1 // pred_check
      _
    $region19: #{a_call__.1} parent=1 // pred_check_branch
      %52 = sbr.rel (0) target = $region21
    $region20: #{a_call__.1} parent=1 // pred_region
      %s54 = ssub.s32 1664, 1664
      %55 = vsyncadd [#allocation7], %s54
      %s56 = sshll.u32 [#allocation8], 4
      %s57 = int_to_ptr.vmem [resolvable:$true] %s56
      %62 = dma.hbm_to_vmem [thread:$0]  %s4, 1664, %s57, [#allocation7], 128, 128, 8
    $region21: #{a_call__.1} parent=1 // pred_fallthru
      _
    // Predicated region
    $region22: #{a_call__.1} parent=1 // pred_check
      _
    $region23: #{a_call__.1} parent=1 // pred_check_branch
      %64 = sbr.rel (0) target = $region25
    $region24: #{a_call__.1} parent=1 // pred_region
      %s66 = ssub.s32 640, 640
      %67 = vsyncadd [#allocation10], %s66
      %s68 = sshll.u32 [#allocation9], 4
      %s69 = int_to_ptr.vmem [resolvable:$true] %s68
      %74 = dma.hbm_to_vmem [thread:$0]  %s5, 640, %s69, [#allocation10], 128, 128, 8
    $region25: #{a_call__.1} parent=1 // pred_fallthru
      _
    // Predicated region
    $region26: #{a_call__.1} parent=1 // pred_check
      _
    $region27: #{a_call__.1} parent=1 // pred_check_branch
      %76 = sbr.rel (0) target = $region29
    $region28: #{a_call__.1} parent=1 // pred_region
      %77 = dma.done [#allocation4], 16
    $region29: #{a_call__.1} parent=1 // pred_fallthru
      _
    // Predicated region
    $region30: #{a_call__.1} parent=1 // pred_check
      _
    $region31: #{a_call__.1} parent=1 // pred_check_branch
      %79 = sbr.rel (0) target = $region33
    $region32: #{a_call__.1} parent=1 // pred_region
      %80 = dma.done [#allocation3], 256
    $region33: #{a_call__.1} parent=1 // pred_fallthru
      _
    // Predicated region
    $region34: #{a_call__.1} parent=1 // pred_check
      _
    $region35: #{a_call__.1} parent=1 // pred_check_branch
      %82 = sbr.rel (0) target = $region37
    $region36: #{a_call__.1} parent=1 // pred_region
      %83 = dma.done [#allocation7], 1536
    $region37: #{a_call__.1} parent=1 // pred_fallthru
      _
    // Predicated region
    $region38: #{a_call__.1} parent=1 // pred_check
      _
    $region39: #{a_call__.1} parent=1 // pred_check_branch
      %85 = sbr.rel (0) target = $region41
    $region40: #{a_call__.1} parent=1 // pred_region
      %86 = dma.done [#allocation7], 1664
    $region41: #{a_call__.1} parent=1 // pred_fallthru
      _
    // Predicated region
    $region42: #{a_call__.1} parent=1 // pred_check
      _
    $region43: #{a_call__.1} parent=1 // pred_check_branch
      %88 = sbr.rel (0) target = $region45
    $region44: #{a_call__.1} parent=1 // pred_region
      %89 = dma.done [#allocation10], 640
    $region45: #{a_call__.1} parent=1 // pred_fallthru
      _
    %90 = sfence
    %v91 = vld [vmem:[#allocation5] sm:$0xff]
    %v92 = vld [vmem:[#allocation5 + $0x8] sm:$0xff]
    %v93 = vld [vmem:[%s2] sm:$0x3]
    %v94 = vld [vmem:[#allocation6] sm:$0xff]
    %v95 = vld [vmem:[#allocation6 + $0x8] sm:$0xff]
    %v96 = vld [vmem:[#allocation6 + $0x10] sm:$0xff]
    %v97 = vld [vmem:[#allocation6 + $0x18] sm:$0xff]
    %v98 = vld [vmem:[#allocation6 + $0x20] sm:$0xff]
    %v99 = vld [vmem:[#allocation6 + $0x28] sm:$0xff]
    %v100 = vld [vmem:[#allocation6 + $0x30] sm:$0xff]
    %v101 = vld [vmem:[#allocation6 + $0x38] sm:$0xff]
    %v102 = vld [vmem:[#allocation6 + $0x40] sm:$0x1]
    %v103 = vld [vmem:[#allocation6 + $0x41] sm:$0x1]
    %v104 = vld [vmem:[#allocation6 + $0x42] sm:$0x1]
    %v105 = vld [vmem:[#allocation6 + $0x43] sm:$0x1]
    %v106 = vlaneseq
    %v107 = vshrl.u32 %v106, 7
    %v108 = vsub.s32 0, %v107
    %v109 = vrot.slane %v102, %v108
    %vm110 = vcmask 261120
    %v112 = vsel %vm110, %v91, 0
    %v115 = vsel %vm110, %v92, 0
    %117 = vmatprep.subr.mxu0 0.0
    %118 = vmatpush1.msra.mxu0 0.0
    %119 = vmatprep.subr.mxu0 0.0
    %120 = vmatpush1.msra.mxu0 0.0
    %121 = vmatprep.subr.mxu0 0.0
    %122 = vmatpush1.msra.mxu0 0.0
    %123 = vmatprep.subr.mxu0 0.0
    %124 = vmatpush1.msra.mxu0 0.0
    %125 = vmatprep.subr.mxu0 0.0
    %126 = vmatpush1.msra.mxu0 0.0
    %127 = vmatprep.subr.mxu0 0.0
    %128 = vmatpush1.msra.mxu0 0.0
    %129 = vmatprep.subr.mxu0 0.0
    %130 = vmatpush1.msra.mxu0 0.0
    %131 = vmatprep.subr.mxu0 0.0
    %132 = vmatpush1.msra.mxu0 0.0
    %133 = vmatprep.subr.mxu0 0.0
    %134 = vmatpush1.msra.mxu0 0.0
    %135 = vmatprep.subr.mxu0 0.0
    %136 = vmatpush1.msra.mxu0 0.0
    %137 = vmatprep.subr.mxu0 0.0
    %138 = vmatpush1.msra.mxu0 0.0
    %139 = vmatprep.subr.mxu0 0.0
    %140 = vmatpush1.msra.mxu0 0.0
    %141 = vmatprep.subr.mxu0 0.0
    %142 = vmatpush1.msra.mxu0 %v97
    %143 = vmatprep.subr.mxu0 0.0
    %144 = vmatpush1.msra.mxu0 %v96
    %145 = vmatprep.subr.mxu0 0.0
    %146 = vmatpush1.msra.mxu0 %v95
    %147 = vmatprep.subr.mxu0 0.0
    %148 = vmatpush1.msra.mxu0 %v94
    %149 = vmatprep.subr.mxu0 0.0
    %150 = vmatpush2.msra.mxu0 0.0
    %151 = vmatprep.subr.mxu0 0.0
    %152 = vmatpush2.msra.mxu0 0.0
    %153 = vmatprep.subr.mxu0 0.0
    %154 = vmatpush2.msra.mxu0 0.0
    %155 = vmatprep.subr.mxu0 0.0
    %156 = vmatpush2.msra.mxu0 0.0
    %157 = vmatprep.subr.mxu0 0.0
    %158 = vmatpush2.msra.mxu0 0.0
    %159 = vmatprep.subr.mxu0 0.0
    %160 = vmatpush2.msra.mxu0 0.0
    %161 = vmatprep.subr.mxu0 0.0
    %162 = vmatpush2.msra.mxu0 0.0
    %163 = vmatprep.subr.mxu0 0.0
    %164 = vmatpush2.msra.mxu0 0.0
    %165 = vmatprep.subr.mxu0 0.0
    %166 = vmatpush2.msra.mxu0 0.0
    %167 = vmatprep.subr.mxu0 0.0
    %168 = vmatpush2.msra.mxu0 0.0
    %169 = vmatprep.subr.mxu0 0.0
    %170 = vmatpush2.msra.mxu0 0.0
    %171 = vmatprep.subr.mxu0 0.0
    %172 = vmatpush2.msra.mxu0 0.0
    %173 = vmatprep.subr.mxu0 0.0
    %174 = vmatpush2.msra.mxu0 0.0
    %175 = vmatprep.subr.mxu0 0.0
    %176 = vmatpush2.msra.mxu0 0.0
    %177 = vmatprep.subr.mxu0 0.0
    %178 = vmatpush2.msra.mxu0 0.0
    %179 = vmatprep.subr.mxu0 0.0
    %180 = vmatpush2.msra.mxu0 0.0
    %181 = vmatprep.mubr.f32.mxu0 0.0
    %182 = vmatmul.mubr.f32.gmra.mxu0 %v112
    %v183 = vpop.f32.mrf.mxu0
    %v184 = vadd.f32 %v109, %v183
    %v185 = vpop.f32.mrf.mxu0
    %186 = vmatprep.mubr.f32.mxu0 0.0
    %187 = vmatmul.mubr.f32.gmra.mxu0 %v115
    %v188 = vpop.f32.mrf.mxu0
    %v189 = vadd.f32 %v109, %v188
    %v190 = vpop.f32.mrf.mxu0
    %191 = vdwg.mxu0
    %v192 = vlaneseq
    %v193 = vshrl.u32 %v192, 7
    %v194 = vsub.s32 0, %v193
    %v195 = vrot.slane %v103, %v194
    %v197 = vsel %vm110, %v93, 0
    %199 = vmatprep.subr.mxu0 0.0
    %200 = vmatpush1.msra.mxu0 0.0
    %201 = vmatprep.subr.mxu0 0.0
    %202 = vmatpush1.msra.mxu0 0.0
    %203 = vmatprep.subr.mxu0 0.0
    %204 = vmatpush1.msra.mxu0 0.0
    %205 = vmatprep.subr.mxu0 0.0
    %206 = vmatpush1.msra.mxu0 0.0
    %207 = vmatprep.subr.mxu0 0.0
    %208 = vmatpush1.msra.mxu0 0.0
    %209 = vmatprep.subr.mxu0 0.0
    %210 = vmatpush1.msra.mxu0 0.0
    %211 = vmatprep.subr.mxu0 0.0
    %212 = vmatpush1.msra.mxu0 0.0
    %213 = vmatprep.subr.mxu0 0.0
    %214 = vmatpush1.msra.mxu0 0.0
    %215 = vmatprep.subr.mxu0 0.0
    %216 = vmatpush1.msra.mxu0 0.0
    %217 = vmatprep.subr.mxu0 0.0
    %218 = vmatpush1.msra.mxu0 0.0
    %219 = vmatprep.subr.mxu0 0.0
    %220 = vmatpush1.msra.mxu0 0.0
    %221 = vmatprep.subr.mxu0 0.0
    %222 = vmatpush1.msra.mxu0 0.0
    %223 = vmatprep.subr.mxu0 0.0
    %224 = vmatpush1.msra.mxu0 %v101
    %225 = vmatprep.subr.mxu0 0.0
    %226 = vmatpush1.msra.mxu0 %v100
    %227 = vmatprep.subr.mxu0 0.0
    %228 = vmatpush1.msra.mxu0 %v99
    %229 = vmatprep.subr.mxu0 0.0
    %230 = vmatpush1.msra.mxu0 %v98
    %231 = vmatprep.subr.mxu0 0.0
    %232 = vmatpush2.msra.mxu0 0.0
    %233 = vmatprep.subr.mxu0 0.0
    %234 = vmatpush2.msra.mxu0 0.0
    %235 = vmatprep.subr.mxu0 0.0
    %236 = vmatpush2.msra.mxu0 0.0
    %237 = vmatprep.subr.mxu0 0.0
    %238 = vmatpush2.msra.mxu0 0.0
    %239 = vmatprep.subr.mxu0 0.0
    %240 = vmatpush2.msra.mxu0 0.0
    %241 = vmatprep.subr.mxu0 0.0
    %242 = vmatpush2.msra.mxu0 0.0
    %243 = vmatprep.subr.mxu0 0.0
    %244 = vmatpush2.msra.mxu0 0.0
    %245 = vmatprep.subr.mxu0 0.0
    %246 = vmatpush2.msra.mxu0 0.0
    %247 = vmatprep.subr.mxu0 0.0
    %248 = vmatpush2.msra.mxu0 0.0
    %249 = vmatprep.subr.mxu0 0.0
    %250 = vmatpush2.msra.mxu0 0.0
    %251 = vmatprep.subr.mxu0 0.0
    %252 = vmatpush2.msra.mxu0 0.0
    %253 = vmatprep.subr.mxu0 0.0
    %254 = vmatpush2.msra.mxu0 0.0
    %255 = vmatprep.subr.mxu0 0.0
    %256 = vmatpush2.msra.mxu0 0.0
    %257 = vmatprep.subr.mxu0 0.0
    %258 = vmatpush2.msra.mxu0 0.0
    %259 = vmatprep.subr.mxu0 0.0
    %260 = vmatpush2.msra.mxu0 0.0
    %261 = vmatprep.subr.mxu0 0.0
    %262 = vmatpush2.msra.mxu0 0.0
    %263 = vmatprep.mubr.f32.mxu0 0.0
    %264 = vmatmul.mubr.f32.gmra.mxu0 %v197
    %v265 = vpop.f32.mrf.mxu0
    %v266 = vadd.f32 %v195, %v265
    %v267 = vpop.f32.mrf.mxu0
    %268 = vdwg.mxu0
    %v271 = vunpack.c.l.s4 1966171168
    %v272 = vunpack.c.0.s8 %v271
    %v273 = vlaneseq
    %v274 = vshrl.u32 %v273, 7
    %v275 = vsub.s32 %v272, %v274
    %v276 = vrot.slane %v266, %v275
    %v277 = vcombine.high %v276, %v276
    %v279 = vunpack.c.l.s4 1966171168
    %v280 = vunpack.c.0.s8 %v279
    %v281 = vlaneseq
    %v282 = vshrl.u32 %v281, 7
    %v283 = vsub.s32 %v280, %v282
    %v284 = vrot.slane %v276, %v283
    %v286 = vunpack.c.l.s4 1966171168
    %v287 = vunpack.c.0.s8 %v286
    %v288 = vlaneseq
    %v289 = vshrl.u32 %v288, 7
    %v290 = vsub.s32 %v287, %v289
    %v291 = vrot.slane %v277, %v290
    %v292 = vlaneseq
    %v293 = vshrl.u32 %v292, 7
    %v294 = vsub.s32 0, %v293
    %v295 = vrot.slane %v284, %v294
    %v296 = vlaneseq
    %v297 = vshrl.u32 %v296, 7
    %v298 = vsub.s32 0, %v297
    %v299 = vrot.slane %v291, %v298
    %v302 = vadd.f32 %v295, %v184
    %v303 = vadd.f32 %v299, %v189
    %v304 = vtanh.pop %v302
    %v305 = vtanh.pop %v303
    %v306 = vlaneseq
    %v307 = vshrl.u32 %v306, 7
    %v308 = vsub.s32 0, %v307
    %v309 = vrot.slane %v104, %v308
    %v310 = vmul.f32 %v304, %v309
    %v311 = vmul.f32 %v305, %v309
    %v312 = vsel %vm110, %v310, 0.0
    %313 = vadd.xlane.f32.xlu0 %v312
    %v314 = vpop.xlane.xlu0 %313
    %v315 = vsel %vm110, %v311, 0.0
    %316 = vadd.xlane.f32.xlu0 %v315
    %v317 = vpop.xlane.xlu0 %316
    %s319 = vtos %v105
    %v320 = vstv %s319
    %v322 = vadd.f32 %v314, %v320
    %v323 = vadd.f32 %v317, %v320
    %v326 = vlaneseq
    %v327 = vand.u32 %v326, 127
    %v328 = vlaneseq
    %v329 = vshrl.u32 %v328, 7
    %v330 = vsub.s32 %v327, %v329
    %v331 = vrot.slane %v322, %v330
    %v332 = vlaneseq
    %v333 = vshrl.u32 %v332, 7
    %v334 = vsub.s32 %v327, %v333
    %v335 = vrot.slane %v323, %v334
    %vm336 = vcmask 1041409
    %v337 = vsel %vm336, %v335, %v331
    %vm339 = vcmask 58368
    %v340 = vsel %vm339, %v337, -inf
    %341 = vmax.xlane.f32.xlu0 %v340
    %v342 = vpop.xlane.xlu0 %341
    %v344 = vlaneseq
    %v345 = vshrl.u32 %v344, 7
    %v346 = vsub.s32 0, %v345
    %v347 = vrot.slane %v342, %v346
    %v348 = vlaneseq
    %v349 = vshrl.u32 %v348, 7
    %v350 = vsub.s32 1, %v349
    %v351 = vrot.slane %v342, %v350
    %v354 = vsub.f32 %v322, %v347
    %v355 = vsub.f32 %v323, %v351
    %v356 = vmul.f32 %v354, 1.442695
    %v357 = vpow.pop %v356
    %v358 = vmul.f32 %v355, 1.442695
    %v359 = vpow.pop %v358
    %362 = vset.pattern.permute.xlu0 0
    %363 = vperm.xlu0 %362, %v357
    %v364 = vpop.permute.xlu0 %363
    %365 = vset.pattern.permute.xlu0 0
    %366 = vperm.xlu0 %365, %v359
    %v367 = vpop.permute.xlu0 %366
    %v368 = vlaneseq
    %v369 = vshrl.u32 %v368, 7
    %v370 = vsub.s32 %v327, %v369
    %v371 = vrot.slane %v364, %v370
    %v372 = vlaneseq
    %v373 = vshrl.u32 %v372, 7
    %v374 = vsub.s32 %v327, %v373
    %v375 = vrot.slane %v367, %v374
    %v376 = vsel %vm336, %v375, %v371
    %v378 = vsel %vm339, %v376, 0.0
    %379 = vadd.xlane.f32.xlu0 %v378
    %v380 = vpop.xlane.xlu0 %379
    %v382 = vlaneseq
    %v383 = vshrl.u32 %v382, 7
    %v384 = vsub.s32 0, %v383
    %v385 = vrot.slane %v380, %v384
    %v386 = vlaneseq
    %v387 = vshrl.u32 %v386, 7
    %v388 = vsub.s32 1, %v387
    %v389 = vrot.slane %v380, %v388
    %v392 = vrcp.pop %v385
    %v393 = vmul.f32 %v357, %v392
    %v394 = vrcp.pop %v389
    %v395 = vmul.f32 %v359, %v394
    %397 = vset.pattern.permute.xlu0 0
    %398 = vperm.xlu0 %397, %v393
    %v399 = vpop.permute.xlu0 %398
    %402 = vset.pattern.permute.xlu0 0
    %403 = vperm.xlu0 %402, %v395
    %v404 = vpop.permute.xlu0 %403
    %v406 = vmul.f32 %v399, %v91
    %v407 = vmul.f32 %v404, %v92
    %v408 = vsel %vm110, %v406, 0.0
    %v409 = vrot.slane %v408, 4
    %v410 = vadd.f32 %v408, %v409
    %v411 = vrot.slane %v410, 2
    %v412 = vadd.f32 %v410, %v411
    %v413 = vrot.slane %v412, 1
    %v414 = vadd.f32 %v412, %v413
    %v415 = vsel %vm110, %v407, 0.0
    %v416 = vrot.slane %v415, 4
    %v417 = vadd.f32 %v415, %v416
    %v418 = vrot.slane %v417, 2
    %v419 = vadd.f32 %v417, %v418
    %v420 = vrot.slane %v419, 1
    %v421 = vadd.f32 %v419, %v420
    %s422 = sld [smem:[#allocation2]]
    %s423 = sadd.s32 %s422, 72
    %s424 = scalar_lea.vmem [#allocation6], %s423
    %v425 = vld [vmem:[%s424] sm:$0x1]
    %s426 = sld [smem:[#allocation2 + $0x1]]
    %s427 = sadd.s32 %s426, 72
    %s428 = scalar_lea.vmem [#allocation6], %s427
    %v429 = vld [vmem:[%s428] sm:$0x1]
    %v431 = vrot.slane %v429, 7
    %vm433 = vcmask 1040384
    %v434 = vsel %vm433, %v425, %v431
    %v437 = vsel %vm336, %v421, %v414
    %438 = vrot.lane.b32.xlu0 %v437, 32
    %v439 = vpop.permute.xlu0 %438
    %v441 = vsel %vm110, %v434, %v439
    %v442 = vld [vmem:[#allocation8] sm:$0xff]
    %v443 = vld [vmem:[#allocation8 + $0x8] sm:$0xff]
    %v444 = vld [vmem:[#allocation8 + $0x10] sm:$0xff]
    %v445 = vld [vmem:[#allocation8 + $0x18] sm:$0xff]
    %v446 = vld [vmem:[#allocation8 + $0x20] sm:$0xff]
    %v447 = vld [vmem:[#allocation8 + $0x28] sm:$0xff]
    %v448 = vld [vmem:[#allocation8 + $0x30] sm:$0xff]
    %v449 = vld [vmem:[#allocation8 + $0x38] sm:$0xff]
    %v450 = vld [vmem:[#allocation8 + $0x40] sm:$0xff]
    %v451 = vld [vmem:[#allocation8 + $0x48] sm:$0xff]
    %v452 = vld [vmem:[#allocation8 + $0x50] sm:$0xff]
    %v453 = vld [vmem:[#allocation8 + $0x58] sm:$0xff]
    %v454 = vld [vmem:[#allocation8 + $0x60] sm:$0x1]
    %v455 = vld [vmem:[#allocation8 + $0x61] sm:$0x1]
    %v456 = vlaneseq
    %v457 = vshrl.u32 %v456, 7
    %v458 = vsub.s32 0, %v457
    %v459 = vrot.slane %v454, %v458
    %vm460 = vcmask 523264
    %v462 = vsel %vm460, %v441, 0
    %464 = vmatprep.subr.mxu0 0.0
    %465 = vmatpush1.msra.mxu0 0.0
    %466 = vmatprep.subr.mxu0 0.0
    %467 = vmatpush1.msra.mxu0 0.0
    %468 = vmatprep.subr.mxu0 0.0
    %469 = vmatpush1.msra.mxu0 0.0
    %470 = vmatprep.subr.mxu0 0.0
    %471 = vmatpush1.msra.mxu0 0.0
    %472 = vmatprep.subr.mxu0 0.0
    %473 = vmatpush1.msra.mxu0 0.0
    %474 = vmatprep.subr.mxu0 0.0
    %475 = vmatpush1.msra.mxu0 0.0
    %476 = vmatprep.subr.mxu0 0.0
    %477 = vmatpush1.msra.mxu0 0.0
    %478 = vmatprep.subr.mxu0 0.0
    %479 = vmatpush1.msra.mxu0 0.0
    %480 = vmatprep.subr.mxu0 0.0
    %481 = vmatpush1.msra.mxu0 %v449
    %482 = vmatprep.subr.mxu0 0.0
    %483 = vmatpush1.msra.mxu0 %v448
    %484 = vmatprep.subr.mxu0 0.0
    %485 = vmatpush1.msra.mxu0 %v447
    %486 = vmatprep.subr.mxu0 0.0
    %487 = vmatpush1.msra.mxu0 %v446
    %488 = vmatprep.subr.mxu0 0.0
    %489 = vmatpush1.msra.mxu0 %v445
    %490 = vmatprep.subr.mxu0 0.0
    %491 = vmatpush1.msra.mxu0 %v444
    %492 = vmatprep.subr.mxu0 0.0
    %493 = vmatpush1.msra.mxu0 %v443
    %494 = vmatprep.subr.mxu0 0.0
    %495 = vmatpush1.msra.mxu0 %v442
    %496 = vmatprep.subr.mxu0 0.0
    %497 = vmatpush2.msra.mxu0 0.0
    %498 = vmatprep.subr.mxu0 0.0
    %499 = vmatpush2.msra.mxu0 0.0
    %500 = vmatprep.subr.mxu0 0.0
    %501 = vmatpush2.msra.mxu0 0.0
    %502 = vmatprep.subr.mxu0 0.0
    %503 = vmatpush2.msra.mxu0 0.0
    %504 = vmatprep.subr.mxu0 0.0
    %505 = vmatpush2.msra.mxu0 0.0
    %506 = vmatprep.subr.mxu0 0.0
    %507 = vmatpush2.msra.mxu0 0.0
    %508 = vmatprep.subr.mxu0 0.0
    %509 = vmatpush2.msra.mxu0 0.0
    %510 = vmatprep.subr.mxu0 0.0
    %511 = vmatpush2.msra.mxu0 0.0
    %512 = vmatprep.subr.mxu0 0.0
    %513 = vmatpush2.msra.mxu0 0.0
    %514 = vmatprep.subr.mxu0 0.0
    %515 = vmatpush2.msra.mxu0 0.0
    %516 = vmatprep.subr.mxu0 0.0
    %517 = vmatpush2.msra.mxu0 0.0
    %518 = vmatprep.subr.mxu0 0.0
    %519 = vmatpush2.msra.mxu0 0.0
    %520 = vmatprep.subr.mxu0 0.0
    %521 = vmatpush2.msra.mxu0 0.0
    %522 = vmatprep.subr.mxu0 0.0
    %523 = vmatpush2.msra.mxu0 0.0
    %524 = vmatprep.subr.mxu0 0.0
    %525 = vmatpush2.msra.mxu0 0.0
    %526 = vmatprep.subr.mxu0 0.0
    %527 = vmatpush2.msra.mxu0 0.0
    %528 = vmatprep.mubr.f32.mxu0 0.0
    %529 = vmatmul.mubr.f32.gmra.mxu0 %v462
    %v530 = vpop.f32.mrf.mxu0
    %v531 = vadd.f32 %v459, %v530
    %v532 = vpop.f32.mrf.mxu0
    %533 = vdwg.mxu0
    %v534 = vlaneseq
    %v535 = vshrl.u32 %v534, 7
    %v536 = vsub.s32 0, %v535
    %v537 = vrot.slane %v455, %v536
    %538 = vmatprep.subr.mxu0 0.0
    %539 = vmatpush1.msra.mxu0 0.0
    %540 = vmatprep.subr.mxu0 0.0
    %541 = vmatpush1.msra.mxu0 0.0
    %542 = vmatprep.subr.mxu0 0.0
    %543 = vmatpush1.msra.mxu0 0.0
    %544 = vmatprep.subr.mxu0 0.0
    %545 = vmatpush1.msra.mxu0 0.0
    %546 = vmatprep.subr.mxu0 0.0
    %547 = vmatpush1.msra.mxu0 0.0
    %548 = vmatprep.subr.mxu0 0.0
    %549 = vmatpush1.msra.mxu0 0.0
    %550 = vmatprep.subr.mxu0 0.0
    %551 = vmatpush1.msra.mxu0 0.0
    %552 = vmatprep.subr.mxu0 0.0
    %553 = vmatpush1.msra.mxu0 0.0
    %554 = vmatprep.subr.mxu0 0.0
    %555 = vmatpush1.msra.mxu0 0.0
    %556 = vmatprep.subr.mxu0 0.0
    %557 = vmatpush1.msra.mxu0 0.0
    %558 = vmatprep.subr.mxu0 0.0
    %559 = vmatpush1.msra.mxu0 0.0
    %560 = vmatprep.subr.mxu0 0.0
    %561 = vmatpush1.msra.mxu0 0.0
    %562 = vmatprep.subr.mxu0 0.0
    %563 = vmatpush1.msra.mxu0 %v453
    %564 = vmatprep.subr.mxu0 0.0
    %565 = vmatpush1.msra.mxu0 %v452
    %566 = vmatprep.subr.mxu0 0.0
    %567 = vmatpush1.msra.mxu0 %v451
    %568 = vmatprep.subr.mxu0 0.0
    %569 = vmatpush1.msra.mxu0 %v450
    %570 = vmatprep.subr.mxu0 0.0
    %571 = vmatpush2.msra.mxu0 0.0
    %572 = vmatprep.subr.mxu0 0.0
    %573 = vmatpush2.msra.mxu0 0.0
    %574 = vmatprep.subr.mxu0 0.0
    %575 = vmatpush2.msra.mxu0 0.0
    %576 = vmatprep.subr.mxu0 0.0
    %577 = vmatpush2.msra.mxu0 0.0
    %578 = vmatprep.subr.mxu0 0.0
    %579 = vmatpush2.msra.mxu0 0.0
    %580 = vmatprep.subr.mxu0 0.0
    %581 = vmatpush2.msra.mxu0 0.0
    %582 = vmatprep.subr.mxu0 0.0
    %583 = vmatpush2.msra.mxu0 0.0
    %584 = vmatprep.subr.mxu0 0.0
    %585 = vmatpush2.msra.mxu0 0.0
    %586 = vmatprep.subr.mxu0 0.0
    %587 = vmatpush2.msra.mxu0 0.0
    %588 = vmatprep.subr.mxu0 0.0
    %589 = vmatpush2.msra.mxu0 0.0
    %590 = vmatprep.subr.mxu0 0.0
    %591 = vmatpush2.msra.mxu0 0.0
    %592 = vmatprep.subr.mxu0 0.0
    %593 = vmatpush2.msra.mxu0 0.0
    %594 = vmatprep.subr.mxu0 0.0
    %595 = vmatpush2.msra.mxu0 0.0
    %596 = vmatprep.subr.mxu0 0.0
    %597 = vmatpush2.msra.mxu0 0.0
    %598 = vmatprep.subr.mxu0 0.0
    %599 = vmatpush2.msra.mxu0 0.0
    %600 = vmatprep.subr.mxu0 0.0
    %601 = vmatpush2.msra.mxu0 0.0
    %602 = vmatprep.mubr.f32.mxu0 0.0
    %603 = vmatmul.mubr.f32.gmra.mxu0 %v197
    %v604 = vpop.f32.mrf.mxu0
    %v605 = vadd.f32 %v537, %v604
    %v606 = vpop.f32.mrf.mxu0
    %607 = vdwg.mxu0
    %v608 = vadd.f32 %v531, %v605
    %v609 = vxor.u32 %v608, 2147483648
    %v610 = vmul.f32 %v609, 1.442695
    %v611 = vpow.pop %v610
    %v612 = vadd.f32 %v611, 1.0
    %v613 = vrcp.pop %v612
    %v614 = vmul.f32 1.0, %v613
    %616 = vrot.lane.b32.xlu0 %v605, 64
    %v617 = vpop.permute.xlu0 %616
    %v619 = vmul.f32 %v614, %v617
    %621 = vrot.lane.b32.xlu0 %v619, 64
    %v622 = vpop.permute.xlu0 %621
    %v624 = vadd.f32 %v531, %v622
    %v625 = vtanh.pop %v624
    %v626 = vsub.f32 1.0, %v614
    %628 = vrot.lane.b32.xlu0 %v625, 96
    %v629 = vpop.permute.xlu0 %628
    %v631 = vmul.f32 %v626, %v629
    %632 = vrot.lane.b32.xlu0 %v93, 32
    %v633 = vpop.permute.xlu0 %632
    %v635 = vmul.f32 %v614, %v633
    %v636 = vadd.f32 %v631, %v635
    %v637 = vld [vmem:[#allocation9] sm:$0xff]
    %v638 = vld [vmem:[#allocation9 + $0x8] sm:$0xff]
    %v639 = vld [vmem:[#allocation9 + $0x10] sm:$0xff]
    %v640 = vld [vmem:[#allocation9 + $0x18] sm:$0xff]
    %v641 = vld [vmem:[#allocation9 + $0x20] sm:$0x1]
    %v642 = vlaneseq
    %v643 = vshrl.u32 %v642, 7
    %v644 = vsub.s32 0, %v643
    %v645 = vrot.slane %v641, %v644
    %647 = vrot.lane.b32.xlu0 %v636, 96
    %v648 = vpop.permute.xlu0 %647
    %v649 = vsel %vm110, %v648, 0
    %651 = vmatprep.subr.mxu0 0.0
    %652 = vmatpush1.msra.mxu0 0.0
    %653 = vmatprep.subr.mxu0 0.0
    %654 = vmatpush1.msra.mxu0 0.0
    %655 = vmatprep.subr.mxu0 0.0
    %656 = vmatpush1.msra.mxu0 0.0
    %657 = vmatprep.subr.mxu0 0.0
    %658 = vmatpush1.msra.mxu0 0.0
    %659 = vmatprep.subr.mxu0 0.0
    %660 = vmatpush1.msra.mxu0 0.0
    %661 = vmatprep.subr.mxu0 0.0
    %662 = vmatpush1.msra.mxu0 0.0
    %663 = vmatprep.subr.mxu0 0.0
    %664 = vmatpush1.msra.mxu0 0.0
    %665 = vmatprep.subr.mxu0 0.0
    %666 = vmatpush1.msra.mxu0 0.0
    %667 = vmatprep.subr.mxu0 0.0
    %668 = vmatpush1.msra.mxu0 0.0
    %669 = vmatprep.subr.mxu0 0.0
    %670 = vmatpush1.msra.mxu0 0.0
    %671 = vmatprep.subr.mxu0 0.0
    %672 = vmatpush1.msra.mxu0 0.0
    %673 = vmatprep.subr.mxu0 0.0
    %674 = vmatpush1.msra.mxu0 0.0
    %675 = vmatprep.subr.mxu0 0.0
    %676 = vmatpush1.msra.mxu0 %v640
    %677 = vmatprep.subr.mxu0 0.0
    %678 = vmatpush1.msra.mxu0 %v639
    %679 = vmatprep.subr.mxu0 0.0
    %680 = vmatpush1.msra.mxu0 %v638
    %681 = vmatprep.subr.mxu0 0.0
    %682 = vmatpush1.msra.mxu0 %v637
    %683 = vmatprep.subr.mxu0 0.0
    %684 = vmatpush2.msra.mxu0 0.0
    %685 = vmatprep.subr.mxu0 0.0
    %686 = vmatpush2.msra.mxu0 0.0
    %687 = vmatprep.subr.mxu0 0.0
    %688 = vmatpush2.msra.mxu0 0.0
    %689 = vmatprep.subr.mxu0 0.0
    %690 = vmatpush2.msra.mxu0 0.0
    %691 = vmatprep.subr.mxu0 0.0
    %692 = vmatpush2.msra.mxu0 0.0
    %693 = vmatprep.subr.mxu0 0.0
    %694 = vmatpush2.msra.mxu0 0.0
    %695 = vmatprep.subr.mxu0 0.0
    %696 = vmatpush2.msra.mxu0 0.0
    %697 = vmatprep.subr.mxu0 0.0
    %698 = vmatpush2.msra.mxu0 0.0
    %699 = vmatprep.subr.mxu0 0.0
    %700 = vmatpush2.msra.mxu0 0.0
    %701 = vmatprep.subr.mxu0 0.0
    %702 = vmatpush2.msra.mxu0 0.0
    %703 = vmatprep.subr.mxu0 0.0
    %704 = vmatpush2.msra.mxu0 0.0
    %705 = vmatprep.subr.mxu0 0.0
    %706 = vmatpush2.msra.mxu0 0.0
    %707 = vmatprep.subr.mxu0 0.0
    %708 = vmatpush2.msra.mxu0 0.0
    %709 = vmatprep.subr.mxu0 0.0
    %710 = vmatpush2.msra.mxu0 0.0
    %711 = vmatprep.subr.mxu0 0.0
    %712 = vmatpush2.msra.mxu0 0.0
    %713 = vmatprep.subr.mxu0 0.0
    %714 = vmatpush2.msra.mxu0 0.0
    %715 = vmatprep.mubr.f32.mxu0 0.0
    %716 = vmatmul.mubr.f32.gmra.mxu0 %v649
    %v717 = vpop.f32.mrf.mxu0
    %v718 = vadd.f32 %v645, %v717
    %v719 = vpop.f32.mrf.mxu0
    %720 = vdwg.mxu0
    %721 = vrot.lane.b32.xlu0 %v636, 112
    %v722 = vpop.permute.xlu0 %721
    %vm724 = vcmask 130048
    %v725 = vsel %vm724, %v718, %v722
    %vm726 = vcmask 386048
    %727 = vst.msk [vmem:[%s6] sm:$0x3] %vm726, %v725
    // Predicated region
    $region46: #{a_call__.1} parent=1 // pred_check
      _
    $region47: #{a_call__.1} parent=1 // pred_check_branch
      %729 = sbr.rel (0) target = $region49
    $region48: #{a_call__.1} parent=1 // pred_region
      _
    $region49: #{a_call__.1} parent=1 // pred_fallthru
      _
    // Predicated region
    $region50: #{a_call__.1} parent=1 // pred_check
      _
    $region51: #{a_call__.1} parent=1 // pred_check_branch
      %731 = sbr.rel (0) target = $region53
    $region52: #{a_call__.1} parent=1 // pred_region
      _
    $region53: #{a_call__.1} parent=1 // pred_fallthru
      _
    %732 = vsyncpa [#allocation3], 1
    %733 = vsyncpa [#allocation7], 1
    %734 = vsyncpa [#allocation10], 1
    %735 = vsyncpa [#allocation4], 1

</llo_original>
